<compile_context>
chip_gen: v5e
topology: v5e:2x2
jax: 0.10.0
libtpu: 0.0.40
codegen_flags: <defaults>
</compile_context>

<pallas_src>
import jax
import jax.numpy as jnp
from jax.experimental import pallas as pl
from jax.experimental.pallas import tpu as pltpu


def value_net_kernel(xT_ref, w1T_ref, b1_ref, w2_ref, b2_ref, o_ref):
    # fc1 on the MXU, f32 operands + f32 accumulation: (H, S) @ (S, TB) -> (H, TB).
    h = jnp.dot(w1T_ref[...], xT_ref[...], preferred_element_type=jnp.float32)
    # Bias + ReLU on the VPU (bias column broadcast along the lane/batch axis).
    h = jnp.maximum(h + b1_ref[...], 0.0)
    # fc2 ([H] -> 1): weighted sublane (XLU) reduction over hidden rows -> (1, TB).
    y = jnp.sum(h * w2_ref[...], axis=0, keepdims=True)
    # Lane-dense (1, TB) store; scalar output bias from SMEM.
    o_ref[...] = (y + b2_ref[0]).astype(o_ref.dtype)


def value_net_forward(x, w1, b1, w2, b2, *, tb=None):
    """x: [B, n_states]; w1: [n_states, n_hiddens]; b1: [1, n_hiddens];
    w2: [n_hiddens, 1]; b2: [1, 1].  Returns [B, 1] float32."""
    B, n_states = x.shape
    n_hiddens = w1.shape[1]

    # One big lane-dense batch tile by default (multiple of 128, capped at 2048).
    if tb is None:
        tb = min(max(B, 128), 2048)
    tb = int(pl.cdiv(tb, 128)) * 128

    num_tiles = int(pl.cdiv(B, tb))
    Bp = num_tiles * tb

    xp = jnp.pad(x, ((0, Bp - B), (0, 0))) if Bp != B else x
    xT = xp.astype(jnp.float32).T                         # (n_states, Bp): batch on lanes
    w1T = w1.astype(jnp.float32).T                        # (n_hiddens, n_states)
    b1c = b1.reshape(n_hiddens, 1).astype(jnp.float32)    # bias column
    w2c = w2.reshape(n_hiddens, 1).astype(jnp.float32)    # fc2 weight column
    b2s = b2.reshape(1).astype(jnp.float32)               # scalar -> SMEM

    flops = 2 * Bp * n_states * n_hiddens + 2 * Bp * n_hiddens
    bytes_accessed = 4 * (xT.size + w1T.size + b1c.size + w2c.size + b2s.size + Bp)

    out = pl.pallas_call(
        value_net_kernel,
        out_shape=jax.ShapeDtypeStruct((1, Bp), jnp.float32),
        grid_spec=pltpu.PrefetchScalarGridSpec(
            num_scalar_prefetch=0,
            grid=(num_tiles,),
            in_specs=[
                # x^T: streamed lane-dense batch tiles (double-buffered by Pallas).
                pl.BlockSpec((n_states, tb), lambda i: (0, i)),
                # Weights / biases: resident across the whole grid (DMA'd once).
                pl.BlockSpec((n_hiddens, n_states), lambda i: (0, 0)),
                pl.BlockSpec((n_hiddens, 1), lambda i: (0, 0)),
                pl.BlockSpec((n_hiddens, 1), lambda i: (0, 0)),
                # b2: scalar on the SMEM path.
                pl.BlockSpec(memory_space=pltpu.MemorySpace.SMEM),
            ],
            # Lane-dense output block: unmasked vst instead of masked (TB,1) stores.
            out_specs=pl.BlockSpec((1, tb), lambda i: (0, i)),
        ),
        compiler_params=pltpu.CompilerParams(
            dimension_semantics=("parallel",),
        ),
        cost_estimate=pl.CostEstimate(
            flops=flops, transcendentals=0, bytes_accessed=bytes_accessed),
    )(xT, w1T, b1c, w2c, b2s)

    # (1, Bp) slab -> (B, 1); padded columns sliced off.
    return out.reshape(Bp, 1)[:B]


def init_params(key, n_states, n_hiddens):
    # PyTorch nn.Linear default init: U(-1/sqrt(fan_in), 1/sqrt(fan_in)).
    k1, k2, k3, k4 = jax.random.split(key, 4)
    bound1 = 1.0 / (n_states ** 0.5)
    bound2 = 1.0 / (n_hiddens ** 0.5)
    w1 = jax.random.uniform(k1, (n_states, n_hiddens), jnp.float32, -bound1, bound1)
    b1 = jax.random.uniform(k2, (1, n_hiddens), jnp.float32, -bound1, bound1)
    w2 = jax.random.uniform(k3, (n_hiddens, 1), jnp.float32, -bound2, bound2)
    b2 = jax.random.uniform(k4, (1, 1), jnp.float32, -bound2, bound2)
    return w1, b1, w2, b2


def _reference(x, w1, b1, w2, b2):
    return jnp.maximum(x @ w1 + b1, 0.0) @ w2 + b2


if __name__ == "__main__":
    n_states = 16
    n_hiddens = 32

    key = jax.random.PRNGKey(0)
    kx, kp, kx2 = jax.random.split(key, 3)
    w1, b1, w2, b2 = init_params(kp, n_states, n_hiddens)

    # Case 1: B=512 -> single lane-dense tile of 512 (default tb).
    x = jax.random.normal(kx, (512, n_states), jnp.float32)
    out = jax.block_until_ready(value_net_forward(x, w1, b1, w2, b2))
    assert out.shape == (512, 1)
    ref = _reference(x, w1, b1, w2, b2)
    assert jnp.allclose(out, ref, atol=1e-4, rtol=1e-4), float(jnp.abs(out - ref).max())

    # Case 2: B=1000 with tb=512 -> 2-tile grid (exercises padding + "parallel" axis).
    x2 = jax.random.normal(kx2, (1000, n_states), jnp.float32)
    out2 = jax.block_until_ready(value_net_forward(x2, w1, b1, w2, b2, tb=512))
    assert out2.shape == (1000, 1)
    ref2 = _reference(x2, w1, b1, w2, b2)
    assert jnp.allclose(out2, ref2, atol=1e-4, rtol=1e-4), float(jnp.abs(out2 - ref2).max())

    print("KERNEL_OK")
</pallas_src>

<mosaic_0001>
module attributes {stable_mosaic.version = 11 : i64} {
  func.func @value_net_kernel(%arg0: i32, %arg1: memref<16x512xf32, #tpu.memory_space<vmem>>, %arg2: memref<32x16xf32, #tpu.memory_space<vmem>>, %arg3: memref<32x1xf32, #tpu.memory_space<vmem>>, %arg4: memref<32x1xf32, #tpu.memory_space<vmem>>, %arg5: memref<1xf32, #tpu.memory_space<smem>>, %arg6: memref<1x512xf32, #tpu.memory_space<vmem>>) attributes {dimension_semantics = [#tpu.dimension_semantics<parallel>], iteration_bounds = array<i64: 1>, scalar_prefetch = 0 : i64, scratch_operands = 0 : i64, tpu.core_type = #tpu.core_type<tc>, window_params = [{transform_indices = @transform_0, window_bounds = array<i64: 16, 512>}, {pipeline_mode = #tpu.pipeline_mode<synchronous>, transform_indices = @transform_1, window_bounds = array<i64: 32, 16>}, {pipeline_mode = #tpu.pipeline_mode<synchronous>, transform_indices = @transform_2, window_bounds = array<i64: 32, 1>}, {pipeline_mode = #tpu.pipeline_mode<synchronous>, transform_indices = @transform_3, window_bounds = array<i64: 32, 1>}, {transform_indices = @transform_4, window_bounds = array<i64: 1>}, {transform_indices = @transform_5, window_bounds = array<i64: 1, 512>}]} {
    %c0 = arith.constant 0 : index
    %c0_0 = arith.constant 0 : index
    %0 = vector.load %arg2[%c0, %c0_0] : memref<32x16xf32, #tpu.memory_space<vmem>>, vector<32x16xf32>
    %c0_1 = arith.constant 0 : index
    %c0_2 = arith.constant 0 : index
    %1 = vector.load %arg1[%c0_1, %c0_2] : memref<16x512xf32, #tpu.memory_space<vmem>>, vector<16x512xf32>
    %cst = arith.constant dense<0.000000e+00> : vector<32x512xf32>
    %2 = tpu.matmul %0, %1, %cst {dimension_numbers = #tpu.dot_dimension_numbers<[1], [0], [0], [1], [0, 0, 1, 1], [], []>} : vector<32x16xf32>, vector<16x512xf32>, vector<32x512xf32> -> vector<32x512xf32>
    %c0_3 = arith.constant 0 : index
    %c0_4 = arith.constant 0 : index
    %3 = vector.load %arg3[%c0_3, %c0_4] : memref<32x1xf32, #tpu.memory_space<vmem>>, vector<32x1xf32>
    %4 = vector.broadcast %3 : vector<32x1xf32> to vector<32x512xf32>
    %5 = arith.addf %2, %4 : vector<32x512xf32>
    %cst_5 = arith.constant 0.000000e+00 : f32
    %6 = vector.broadcast %cst_5 : f32 to vector<32x512xf32>
    %7 = arith.maximumf %5, %6 : vector<32x512xf32>
    %c0_6 = arith.constant 0 : index
    %c0_7 = arith.constant 0 : index
    %8 = vector.load %arg4[%c0_6, %c0_7] : memref<32x1xf32, #tpu.memory_space<vmem>>, vector<32x1xf32>
    %9 = vector.broadcast %8 : vector<32x1xf32> to vector<32x512xf32>
    %10 = arith.mulf %7, %9 : vector<32x512xf32>
    %cst_8 = arith.constant dense<0.000000e+00> : vector<512xf32>
    %11 = vector.multi_reduction <add>, %10, %cst_8 [0] : vector<32x512xf32> to vector<512xf32>
    %12 = vector.shape_cast %11 : vector<512xf32> to vector<1x512xf32>
    %c0_9 = arith.constant 0 : index
    %13 = memref.load %arg5[%c0_9] : memref<1xf32, #tpu.memory_space<smem>>
    %14 = vector.broadcast %13 : f32 to vector<1x512xf32>
    %15 = arith.addf %12, %14 : vector<1x512xf32>
    %c0_10 = arith.constant 0 : index
    %c0_11 = arith.constant 0 : index
    %16 = vector.load %arg6[%c0_10, %c0_11] : memref<1x512xf32, #tpu.memory_space<vmem>>, vector<1x512xf32>
    tpu.vector_store %arg6[%c0_10, %c0_11], %15 {strides = array<i32>} : memref<1x512xf32, #tpu.memory_space<vmem>>, vector<1x512xf32>,
    return
  }
  func.func @transform_0(%arg0: i32) -> (i32, i32) {
    %c0_i32 = arith.constant 0 : i32
    %c0_i32_0 = arith.constant 0 : i32
    return %c0_i32, %arg0 : i32, i32
  }
  func.func @transform_1(%arg0: i32) -> (i32, i32) {
    %c0_i32 = arith.constant 0 : i32
    %c0_i32_0 = arith.constant 0 : i32
    %c0_i32_1 = arith.constant 0 : i32
    return %c0_i32, %c0_i32_0 : i32, i32
  }
  func.func @transform_2(%arg0: i32) -> (i32, i32) {
    %c0_i32 = arith.constant 0 : i32
    %c0_i32_0 = arith.constant 0 : i32
    %c0_i32_1 = arith.constant 0 : i32
    return %c0_i32, %c0_i32_0 : i32, i32
  }
  func.func @transform_3(%arg0: i32) -> (i32, i32) {
    %c0_i32 = arith.constant 0 : i32
    %c0_i32_0 = arith.constant 0 : i32
    %c0_i32_1 = arith.constant 0 : i32
    return %c0_i32, %c0_i32_0 : i32, i32
  }
  func.func @transform_4(%arg0: i32) -> i32 {
    %c0_i32 = arith.constant 0 : i32
    %c0_i32_0 = arith.constant 0 : i32
    return %c0_i32 : i32
  }
  func.func @transform_5(%arg0: i32) -> (i32, i32) {
    %c0_i32 = arith.constant 0 : i32
    %c0_i32_0 = arith.constant 0 : i32
    return %c0_i32, %arg0 : i32, i32
  }
}

</mosaic_0001>

<llo_original>
// kernel: tpu_custom_call.1
$region0: #{tpu_custom_call.1}
  #allocation0 [shape = 'u32[]', space=smem, size = 0x4, offset = 0x4, fixed_abs, tag = 'smem constant byte address 0x4 - core index']
  #allocation1 [shape = 'u32[72,128]{1,0:T(1,128)}', space=vmem, size = 0x9000, scoped, tag = 'internal scratch']
  #allocation2 [shape = 'f32[1]{0:T(128)S(6)}', space=smem, size = 0x200, scoped, tag = 'scoped memory for tpu_custom_call.1']
  %s0 = inlined_call_operand.vmem [shape: f32[16,512], index: 0, kind: input, shape index: {}]
  %s1 = inlined_call_operand.vmem [shape: f32[32,16], index: 1, kind: input, shape index: {}]
  %s2 = inlined_call_operand.vmem [shape: f32[32,1], index: 2, kind: input, shape index: {}]
  %s3 = inlined_call_operand.vmem [shape: f32[32,1], index: 3, kind: input, shape index: {}]
  %s4 = inlined_call_operand.<no memory space> [shape: f32[1], index: 4, kind: input, shape index: {}]
  %s5 = inlined_call_operand.hbm [shape: f32[1,512], index: 5, kind: output, shape index: {}]
  %s6 = sld [smem:[#allocation0]]
  $region30: #{tpu_custom_call.1} parent=0
    _
  %s8 = ssub.s32 1, %s6
  %s9 = scalar_select 0, %s8, %s6
  %10 = sst [smem:[#allocation2]] %s4
  $region1: #{tpu_custom_call.1} parent=0
    #allocation3 [shape = 'u8[2048]{0}', space=vmem, size = 0x800, scoped, tag = 'output window, operand 0, single buffered']
    #allocation4 [shape = 's32[1]{0}', space=sflag, size = 0x4, scoped, tag = 'scoped memory for tpu_custom_call.1']
    %11 = vsyncpa [#allocation4], 0
    // Predicated region
    $region2: #{tpu_custom_call.1} parent=1 // pred_check
      _
    $region3: #{tpu_custom_call.1} parent=1 // pred_check_branch
      %13 = sbr.rel (0) target = $region5
    $region4: #{tpu_custom_call.1} parent=1 // pred_region
      _
    $region5: #{tpu_custom_call.1} parent=1 // pred_fallthru
      _
    // Predicated region
    $region6: #{tpu_custom_call.1} parent=1 // pred_check
      _
    $region7: #{tpu_custom_call.1} parent=1 // pred_check_branch
      %15 = sbr.rel (0) target = $region9
    $region8: #{tpu_custom_call.1} parent=1 // pred_region
      _
    $region9: #{tpu_custom_call.1} parent=1 // pred_fallthru
      _
    // Predicated region
    $region10: #{tpu_custom_call.1} parent=1 // pred_check
      _
    $region11: #{tpu_custom_call.1} parent=1 // pred_check_branch
      %17 = sbr.rel (0) target = $region13
    $region12: #{tpu_custom_call.1} parent=1 // pred_region
      _
    $region13: #{tpu_custom_call.1} parent=1 // pred_fallthru
      _
    // Predicated region
    $region14: #{tpu_custom_call.1} parent=1 // pred_check
      _
    $region15: #{tpu_custom_call.1} parent=1 // pred_check_branch
      %19 = sbr.rel (0) target = $region17
    $region16: #{tpu_custom_call.1} parent=1 // pred_region
      _
    $region17: #{tpu_custom_call.1} parent=1 // pred_fallthru
      _
    // Predicated region
    $region18: #{tpu_custom_call.1} parent=1 // pred_check
      _
    $region19: #{tpu_custom_call.1} parent=1 // pred_check_branch
      %21 = sbr.rel (0) target = $region21
    $region20: #{tpu_custom_call.1} parent=1 // pred_region
      _
    $region21: #{tpu_custom_call.1} parent=1 // pred_fallthru
      _
    %v22 = vld [vmem:[%s1] sm:$0xff]
    %v23 = vld [vmem:[%s1 + $0x8] sm:$0xff]
    %v24 = vld [vmem:[%s1 + $0x10] sm:$0xff]
    %v25 = vld [vmem:[%s1 + $0x18] sm:$0xff]
    %v26 = vld [vmem:[%s0] sm:$0xff]
    %v27 = vld [vmem:[%s0 + $0x8] sm:$0xff]
    %v28 = vld [vmem:[%s0 + $0x10] sm:$0xff]
    %v29 = vld [vmem:[%s0 + $0x18] sm:$0xff]
    %v30 = vld [vmem:[%s0 + $0x20] sm:$0xff]
    %v31 = vld [vmem:[%s0 + $0x28] sm:$0xff]
    %v32 = vld [vmem:[%s0 + $0x30] sm:$0xff]
    %v33 = vld [vmem:[%s0 + $0x38] sm:$0xff]
    %v34 = vld [vmem:[%s2] sm:$0xff]
    %v35 = vld [vmem:[%s2 + $0x8] sm:$0xff]
    %v36 = vld [vmem:[%s2 + $0x10] sm:$0xff]
    %v37 = vld [vmem:[%s2 + $0x18] sm:$0xff]
    %39 = vset.pattern.permute.xlu0 0
    %40 = vperm.xlu0 %39, %v34
    %v41 = vpop.permute.xlu0 %40
    %44 = vset.pattern.permute.xlu0 0
    %45 = vperm.xlu0 %44, %v35
    %v46 = vpop.permute.xlu0 %45
    %49 = vset.pattern.permute.xlu0 0
    %50 = vperm.xlu0 %49, %v36
    %v51 = vpop.permute.xlu0 %50
    %54 = vset.pattern.permute.xlu0 0
    %55 = vperm.xlu0 %54, %v37
    %v56 = vpop.permute.xlu0 %55
    %vm58 = vcmask 130048
    %v60 = vsel %vm58, %v22, 0
    %v63 = vsel %vm58, %v23, 0
    %v66 = vsel %vm58, %v24, 0
    %v69 = vsel %vm58, %v25, 0
    %71 = vmatpush.msra.mxu0 0.0
    %72 = vmatpush.msra.mxu0 0.0
    %73 = vmatpush.msra.mxu0 0.0
    %74 = vmatpush.msra.mxu0 0.0
    %75 = vmatpush.msra.mxu0 0.0
    %76 = vmatpush.msra.mxu0 0.0
    %77 = vmatpush.msra.mxu0 0.0
    %78 = vmatpush.msra.mxu0 0.0
    %79 = vmatpush.msra.mxu0 0.0
    %80 = vmatpush.msra.mxu0 0.0
    %81 = vmatpush.msra.mxu0 0.0
    %82 = vmatpush.msra.mxu0 0.0
    %83 = vmatpush.msra.mxu0 0.0
    %84 = vmatpush.msra.mxu0 0.0
    %85 = vmatpush.msra.mxu0 %v30
    %86 = vmatpush.msra.mxu0 %v26
    %87 = vmatmul.f32.gmra.mxu0 %v60
    %v88 = vpop.f32.mrf.mxu0
    %v89 = vadd.f32 %v41, %v88
    %90 = vmatmul.f32.gmra.mxu0 %v63
    %v91 = vpop.f32.mrf.mxu0
    %v92 = vadd.f32 %v46, %v91
    %93 = vmatmul.f32.gmra.mxu0 %v66
    %v94 = vpop.f32.mrf.mxu0
    %v95 = vadd.f32 %v51, %v94
    %96 = vmatmul.f32.gmra.mxu0 %v69
    %v97 = vpop.f32.mrf.mxu0
    %v98 = vadd.f32 %v56, %v97
    %99 = vdwg.mxu0
    %100 = vmatpush.msra.mxu0 0.0
    %101 = vmatpush.msra.mxu0 0.0
    %102 = vmatpush.msra.mxu0 0.0
    %103 = vmatpush.msra.mxu0 0.0
    %104 = vmatpush.msra.mxu0 0.0
    %105 = vmatpush.msra.mxu0 0.0
    %106 = vmatpush.msra.mxu0 0.0
    %107 = vmatpush.msra.mxu0 0.0
    %108 = vmatpush.msra.mxu0 0.0
    %109 = vmatpush.msra.mxu0 0.0
    %110 = vmatpush.msra.mxu0 0.0
    %111 = vmatpush.msra.mxu0 0.0
    %112 = vmatpush.msra.mxu0 0.0
    %113 = vmatpush.msra.mxu0 0.0
    %114 = vmatpush.msra.mxu0 %v31
    %115 = vmatpush.msra.mxu0 %v27
    %116 = vmatmul.f32.gmra.mxu0 %v60
    %v117 = vpop.f32.mrf.mxu0
    %v118 = vadd.f32 %v41, %v117
    %119 = vmatmul.f32.gmra.mxu0 %v63
    %v120 = vpop.f32.mrf.mxu0
    %v121 = vadd.f32 %v46, %v120
    %122 = vmatmul.f32.gmra.mxu0 %v66
    %v123 = vpop.f32.mrf.mxu0
    %v124 = vadd.f32 %v51, %v123
    %125 = vmatmul.f32.gmra.mxu0 %v69
    %v126 = vpop.f32.mrf.mxu0
    %v127 = vadd.f32 %v56, %v126
    %128 = vdwg.mxu0
    %129 = vmatpush.msra.mxu0 0.0
    %130 = vmatpush.msra.mxu0 0.0
    %131 = vmatpush.msra.mxu0 0.0
    %132 = vmatpush.msra.mxu0 0.0
    %133 = vmatpush.msra.mxu0 0.0
    %134 = vmatpush.msra.mxu0 0.0
    %135 = vmatpush.msra.mxu0 0.0
    %136 = vmatpush.msra.mxu0 0.0
    %137 = vmatpush.msra.mxu0 0.0
    %138 = vmatpush.msra.mxu0 0.0
    %139 = vmatpush.msra.mxu0 0.0
    %140 = vmatpush.msra.mxu0 0.0
    %141 = vmatpush.msra.mxu0 0.0
    %142 = vmatpush.msra.mxu0 0.0
    %143 = vmatpush.msra.mxu0 %v32
    %144 = vmatpush.msra.mxu0 %v28
    %145 = vmatmul.f32.gmra.mxu0 %v60
    %v146 = vpop.f32.mrf.mxu0
    %v147 = vadd.f32 %v41, %v146
    %148 = vmatmul.f32.gmra.mxu0 %v63
    %v149 = vpop.f32.mrf.mxu0
    %v150 = vadd.f32 %v46, %v149
    %151 = vmatmul.f32.gmra.mxu0 %v66
    %v152 = vpop.f32.mrf.mxu0
    %v153 = vadd.f32 %v51, %v152
    %154 = vmatmul.f32.gmra.mxu0 %v69
    %v155 = vpop.f32.mrf.mxu0
    %v156 = vadd.f32 %v56, %v155
    %157 = vdwg.mxu0
    %158 = vmatpush.msra.mxu0 0.0
    %159 = vmatpush.msra.mxu0 0.0
    %160 = vmatpush.msra.mxu0 0.0
    %161 = vmatpush.msra.mxu0 0.0
    %162 = vmatpush.msra.mxu0 0.0
    %163 = vmatpush.msra.mxu0 0.0
    %164 = vmatpush.msra.mxu0 0.0
    %165 = vmatpush.msra.mxu0 0.0
    %166 = vmatpush.msra.mxu0 0.0
    %167 = vmatpush.msra.mxu0 0.0
    %168 = vmatpush.msra.mxu0 0.0
    %169 = vmatpush.msra.mxu0 0.0
    %170 = vmatpush.msra.mxu0 0.0
    %171 = vmatpush.msra.mxu0 0.0
    %172 = vmatpush.msra.mxu0 %v33
    %173 = vmatpush.msra.mxu0 %v29
    %174 = vmatmul.f32.gmra.mxu0 %v60
    %v175 = vpop.f32.mrf.mxu0
    %v176 = vadd.f32 %v41, %v175
    %177 = vmatmul.f32.gmra.mxu0 %v63
    %v178 = vpop.f32.mrf.mxu0
    %v179 = vadd.f32 %v46, %v178
    %180 = vmatmul.f32.gmra.mxu0 %v66
    %v181 = vpop.f32.mrf.mxu0
    %v182 = vadd.f32 %v51, %v181
    %183 = vmatmul.f32.gmra.mxu0 %v69
    %v184 = vpop.f32.mrf.mxu0
    %v185 = vadd.f32 %v56, %v184
    %186 = vdwg.mxu0
    %v187 = vmax.f32 %v89, 0.0
    %v188 = vmax.f32 %v118, 0.0
    %v189 = vmax.f32 %v147, 0.0
    %v190 = vmax.f32 %v176, 0.0
    %v191 = vmax.f32 %v92, 0.0
    %v192 = vmax.f32 %v121, 0.0
    %v193 = vmax.f32 %v150, 0.0
    %v194 = vmax.f32 %v179, 0.0
    %v195 = vmax.f32 %v95, 0.0
    %v196 = vmax.f32 %v124, 0.0
    %v197 = vmax.f32 %v153, 0.0
    %v198 = vmax.f32 %v182, 0.0
    %v199 = vmax.f32 %v98, 0.0
    %v200 = vmax.f32 %v127, 0.0
    %v201 = vmax.f32 %v156, 0.0
    %v202 = vmax.f32 %v185, 0.0
    %v203 = vld [vmem:[%s3] sm:$0xff]
    %v204 = vld [vmem:[%s3 + $0x8] sm:$0xff]
    %v205 = vld [vmem:[%s3 + $0x10] sm:$0xff]
    %v206 = vld [vmem:[%s3 + $0x18] sm:$0xff]
    %208 = vset.pattern.permute.xlu0 0
    %209 = vperm.xlu0 %208, %v203
    %v210 = vpop.permute.xlu0 %209
    %213 = vset.pattern.permute.xlu0 0
    %214 = vperm.xlu0 %213, %v204
    %v215 = vpop.permute.xlu0 %214
    %218 = vset.pattern.permute.xlu0 0
    %219 = vperm.xlu0 %218, %v205
    %v220 = vpop.permute.xlu0 %219
    %223 = vset.pattern.permute.xlu0 0
    %224 = vperm.xlu0 %223, %v206
    %v225 = vpop.permute.xlu0 %224
    %v227 = vmul.f32 %v187, %v210
    %v228 = vmul.f32 %v188, %v210
    %v229 = vmul.f32 %v189, %v210
    %v230 = vmul.f32 %v190, %v210
    %v231 = vmul.f32 %v191, %v215
    %v232 = vmul.f32 %v192, %v215
    %v233 = vmul.f32 %v193, %v215
    %v234 = vmul.f32 %v194, %v215
    %v235 = vmul.f32 %v195, %v220
    %v236 = vmul.f32 %v196, %v220
    %v237 = vmul.f32 %v197, %v220
    %v238 = vmul.f32 %v198, %v220
    %v239 = vmul.f32 %v199, %v225
    %v240 = vmul.f32 %v200, %v225
    %v241 = vmul.f32 %v201, %v225
    %v242 = vmul.f32 %v202, %v225
    %v243 = vadd.f32 %v227, %v231
    %v244 = vadd.f32 %v243, %v235
    %v245 = vadd.f32 %v244, %v239
    %v246 = vrot.slane %v245, 4
    %v247 = vadd.f32 %v245, %v246
    %v248 = vrot.slane %v247, 2
    %v249 = vadd.f32 %v247, %v248
    %v250 = vrot.slane %v249, 1
    %v251 = vadd.f32 %v249, %v250
    %v252 = vadd.f32 %v228, %v232
    %v253 = vadd.f32 %v252, %v236
    %v254 = vadd.f32 %v253, %v240
    %v255 = vrot.slane %v254, 4
    %v256 = vadd.f32 %v254, %v255
    %v257 = vrot.slane %v256, 2
    %v258 = vadd.f32 %v256, %v257
    %v259 = vrot.slane %v258, 1
    %v260 = vadd.f32 %v258, %v259
    %v261 = vadd.f32 %v229, %v233
    %v262 = vadd.f32 %v261, %v237
    %v263 = vadd.f32 %v262, %v241
    %v264 = vrot.slane %v263, 4
    %v265 = vadd.f32 %v263, %v264
    %v266 = vrot.slane %v265, 2
    %v267 = vadd.f32 %v265, %v266
    %v268 = vrot.slane %v267, 1
    %v269 = vadd.f32 %v267, %v268
    %v270 = vadd.f32 %v230, %v234
    %v271 = vadd.f32 %v270, %v238
    %v272 = vadd.f32 %v271, %v242
    %v273 = vrot.slane %v272, 4
    %v274 = vadd.f32 %v272, %v273
    %v275 = vrot.slane %v274, 2
    %v276 = vadd.f32 %v274, %v275
    %v277 = vrot.slane %v276, 1
    %v278 = vadd.f32 %v276, %v277
    %s279 = sld [smem:[#allocation2]]
    %v280 = vstv %s279
    %v281 = vadd.f32 %v251, %v280
    %v282 = vadd.f32 %v260, %v280
    %v283 = vadd.f32 %v269, %v280
    %v284 = vadd.f32 %v278, %v280
    %v289 = vrot.slane %v282, 7
    %v290 = vrot.slane %v283, 6
    %v291 = vrot.slane %v284, 5
    %vm292 = vcmask 1040384
    %v293 = vsel %vm292, %v281, %v289
    %vm294 = vcmask 1042434
    %v295 = vsel %vm294, %v290, %v291
    %vm296 = vcmask 1041408
    %v297 = vsel %vm296, %v293, %v295
    %v299 = vlaneseq
    %vm300 = vcmp.ge.s32.totalorder %v299, 0
    %vm301 = vcmp.lt.s32.totalorder %v299, 512
    %vm302 = vmand %vm300, %vm301
    %303 = vst.msk [vmem:[#allocation3] sm:$0xf] %vm302, %v297
    // Predicated region
    $region22: #{tpu_custom_call.1} parent=1 // pred_check
      _
    $region23: #{tpu_custom_call.1} parent=1 // pred_check_branch
      %305 = sbr.rel (0) target = $region25
    $region24: #{tpu_custom_call.1} parent=1 // pred_region
      %307 = vsyncadd [#allocation4], 0
      %s309 = sshll.u32 [#allocation3], 4
      %s310 = int_to_ptr.vmem [resolvable:$true] %s309
      %s311 = sshll.u32 %s5, 4
      %s312 = int_to_ptr.hbm [resolvable:$true] %s311
      %314 = dma.vmem_to_hbm [thread:$0]  %s310, 64, %s312, [#allocation4]
    $region25: #{tpu_custom_call.1} parent=1 // pred_fallthru
      _
    // Predicated region
    $region26: #{tpu_custom_call.1} parent=1 // pred_check
      _
    $region27: #{tpu_custom_call.1} parent=1 // pred_check_branch
      %316 = sbr.rel (0) target = $region29
    $region28: #{tpu_custom_call.1} parent=1 // pred_region
      %318 = dma.done [#allocation4], 64
    $region29: #{tpu_custom_call.1} parent=1 // pred_fallthru
      _
    %319 = vsyncpa [#allocation4], 1

</llo_original>
